<compile_context>
chip_gen: v7x
topology: tpu7x:2x2x1
jax: 0.10.0
libtpu: 0.0.40
codegen_flags: <defaults>
</compile_context>

<pallas_src>
import jax
import jax.numpy as jnp
import numpy as np
from jax.experimental import pallas as pl
from jax.experimental.pallas import tpu as pltpu


def _round_up(n, m):
    return ((n + m - 1) // m) * m


def _lstm_gate_update(gates, c_prev, R):
    """gates: (B, 4R) f32, PyTorch LSTMCell gate order i, f, g, o."""
    i_g = jax.nn.sigmoid(gates[:, 0 * R:1 * R])
    f_g = jax.nn.sigmoid(gates[:, 1 * R:2 * R])
    g_g = jnp.tanh(gates[:, 2 * R:3 * R])
    o_g = jax.nn.sigmoid(gates[:, 3 * R:4 * R])
    c_new = f_g * c_prev + i_g * g_g
    h_new = o_g * jnp.tanh(c_new)
    return h_new, c_new


# ---------------------------------------------------------------------------
# Streamed path: grid over layers, per-layer weight block DMA-pipelined.
# ---------------------------------------------------------------------------
def _stacked_lstm_streamed_kernel(x_ref, h0_ref, c0_ref, w_ref, b_ref,
                                  h1_ref, c1_ref, z_ref):
    layer = pl.program_id(0)
    R = h1_ref.shape[2]                                   # rnn_size

    # z layout (bf16, persistent across layers): [:, :R] = h_prev of this layer,
    # [:, R:] = this layer's input.  Columns [2R : R+P] keep the (padded) x from
    # layer 0 for all later layers; that stale data hits zero-padded weight rows
    # written in init_params, so it contributes nothing (invariant!).
    @pl.when(layer == 0)
    def _():
        z_ref[:, R:] = x_ref[...].astype(jnp.bfloat16)

    z_ref[:, :R] = h0_ref[0].astype(jnp.bfloat16)

    # One fused MXU matmul per layer: bf16 operands, f32 accumulation.
    gates = (jnp.dot(z_ref[...], w_ref[0], preferred_element_type=jnp.float32)
             + b_ref[0])                                  # (B, 4R) f32

    h_new, c_new = _lstm_gate_update(gates, c0_ref[0].astype(jnp.float32), R)

    h1_ref[0] = h_new.astype(h1_ref.dtype)
    c1_ref[0] = c_new.astype(c1_ref.dtype)
    # Carry dropout(h_new) (= h_new for p=0 / eval) as the next layer's input.
    z_ref[:, R:2 * R] = h_new.astype(jnp.bfloat16)


# ---------------------------------------------------------------------------
# Fused path: single grid step, all-layer weights VMEM-resident, static unroll.
# ---------------------------------------------------------------------------
def _stacked_lstm_fused_kernel(x_ref, h0_ref, c0_ref, w_ref, b_ref,
                               h1_ref, c1_ref, z_ref):
    L, _, R = h1_ref.shape

    z_ref[:, R:] = x_ref[...].astype(jnp.bfloat16)
    for i in range(L):        # L is tiny here; static unroll (no grid overhead)
        z_ref[:, :R] = h0_ref[i].astype(jnp.bfloat16)
        gates = (jnp.dot(z_ref[...], w_ref[i],
                         preferred_element_type=jnp.float32) + b_ref[i])
        h_new, c_new = _lstm_gate_update(gates, c0_ref[i].astype(jnp.float32), R)
        h1_ref[i] = h_new.astype(h1_ref.dtype)
        c1_ref[i] = c_new.astype(c1_ref.dtype)
        z_ref[:, R:2 * R] = h_new.astype(jnp.bfloat16)


def _vmem_limit(raw_bytes):
    # 1.5x headroom + 2 MiB; clamp to sane bounds (v7x physical is 64 MiB).
    return int(min(max(int(raw_bytes * 1.5) + (2 << 20), 8 << 20), 100 << 20))


def stacked_lstm_forward(x, h0, c0, params, *, force_path=None):
    """x: (B, input_size); h0, c0: (L, B, R).

    Returns (hout (B, R), (h1 (L, B, R), c1 (L, B, R))), matching the module's
    forward with dropout p = 0 / eval (hout == dropout(h1[-1]) == h1[-1]).
    """
    w_all, b_all = params                 # (L, R+P, 4R) bf16, (L, 1, 4R) f32
    L, B, R = h0.shape
    KP = w_all.shape[1]                   # R + P
    P = KP - R
    G = w_all.shape[2]                    # 4R

    x_pad = x.astype(jnp.float32)
    if x.shape[1] < P:
        x_pad = jnp.pad(x_pad, ((0, 0), (0, P - x.shape[1])))

    # --- VMEM footprint (used for path choice and vmem_limit_bytes). ---------
    w_layer_bytes = KP * G * w_all.dtype.itemsize
    bias_layer_bytes = G * 4
    state_block_bytes = B * R * 4                       # one of h0/c0/h1/c1
    z_bytes = B * KP * 2
    x_bytes = B * P * 4
    gate_bytes = B * G * 4
    streamed_raw = (2 * (w_layer_bytes + bias_layer_bytes
                         + 4 * state_block_bytes)        # double-buffered blocks
                    + 2 * x_bytes + z_bytes + gate_bytes)
    fused_raw = (2 * L * (w_layer_bytes + bias_layer_bytes
                          + 4 * state_block_bytes)
                 + 2 * x_bytes + z_bytes + gate_bytes)

    if force_path == "fused":
        use_fused = True
    elif force_path == "streamed":
        use_fused = False
    elif force_path is None:
        use_fused = fused_raw <= (20 << 20)             # comfortable on v5e-v7x
    else:
        raise ValueError(f"unknown force_path={force_path!r}")

    out_shape = (jax.ShapeDtypeStruct((L, B, R), jnp.float32),
                 jax.ShapeDtypeStruct((L, B, R), jnp.float32))

    if use_fused:
        grid_spec = pltpu.PrefetchScalarGridSpec(
            num_scalar_prefetch=0,
            grid=(1,),
            in_specs=[
                pl.BlockSpec((B, P), lambda i: (0, 0)),           # x (padded)
                pl.BlockSpec((L, B, R), lambda i: (0, 0, 0)),     # h0
                pl.BlockSpec((L, B, R), lambda i: (0, 0, 0)),     # c0
                pl.BlockSpec((L, KP, G), lambda i: (0, 0, 0)),    # fused weights
                pl.BlockSpec((L, 1, G), lambda i: (0, 0, 0)),     # fused bias
            ],
            out_specs=(
                pl.BlockSpec((L, B, R), lambda i: (0, 0, 0)),     # h1
                pl.BlockSpec((L, B, R), lambda i: (0, 0, 0)),     # c1
            ),
            scratch_shapes=[pltpu.VMEM((B, KP), jnp.bfloat16)],   # z carry
        )
        kernel = _stacked_lstm_fused_kernel
        vmem_bytes = _vmem_limit(fused_raw)
    else:
        grid_spec = pltpu.PrefetchScalarGridSpec(
            num_scalar_prefetch=0,
            grid=(L,),
            in_specs=[
                pl.BlockSpec((B, P), lambda i: (0, 0)),           # x, resident
                pl.BlockSpec((1, B, R), lambda i: (i, 0, 0)),     # h0[i]
                pl.BlockSpec((1, B, R), lambda i: (i, 0, 0)),     # c0[i]
                pl.BlockSpec((1, KP, G), lambda i: (i, 0, 0)),    # weights[i]
                pl.BlockSpec((1, 1, G), lambda i: (i, 0, 0)),     # bias[i]
            ],
            out_specs=(
                pl.BlockSpec((1, B, R), lambda i: (i, 0, 0)),     # h1[i]
                pl.BlockSpec((1, B, R), lambda i: (i, 0, 0)),     # c1[i]
            ),
            scratch_shapes=[pltpu.VMEM((B, KP), jnp.bfloat16)],   # z carry
        )
        kernel = _stacked_lstm_streamed_kernel
        vmem_bytes = _vmem_limit(streamed_raw)

    h1, c1 = pl.pallas_call(
        kernel,
        out_shape=out_shape,
        grid_spec=grid_spec,
        compiler_params=pltpu.CompilerParams(
            # Layer iterations are data-dependent -> "arbitrary".
            dimension_semantics=("arbitrary",),
            vmem_limit_bytes=vmem_bytes),
    )(x_pad, h0, c0, w_all, b_all)

    # hout = dropout(h1[-1]) = h1[-1] for p=0 / eval.
    return h1[-1], (h1, c1)


def reference_forward(x, h0, c0, params):
    """Plain-JAX reference mirroring the PyTorch forward (dropout p=0), with the
    same bf16-matmul / f32-accumulate precision as the kernel."""
    w_all, b_all = params
    L, B, R = h0.shape
    P = w_all.shape[1] - R
    cur = jnp.pad(x.astype(jnp.float32), ((0, 0), (0, P - x.shape[1])))
    hs, cs = [], []
    for i in range(L):
        z = jnp.concatenate([h0[i].astype(jnp.float32), cur],
                            axis=1).astype(jnp.bfloat16)
        gates = (jnp.dot(z, w_all[i], preferred_element_type=jnp.float32)
                 + b_all[i])
        h_new, c_new = _lstm_gate_update(gates, c0[i].astype(jnp.float32), R)
        hs.append(h_new)
        cs.append(c_new)
        cur = jnp.pad(h_new, ((0, 0), (0, P - R)))
    return hs[-1], jnp.stack(hs), jnp.stack(cs)


def init_params(key, num_layers, input_size, rnn_size, w_dtype=jnp.bfloat16):
    """nn.LSTMCell-style init (uniform +/- 1/sqrt(R)), prepped for the kernel:
    per-layer fused weight [W_hh^T ; W_ih^T (row-padded to P)] -> (R+P, 4R),
    per-layer fused bias b_ih + b_hh -> (1, 4R).  Zero rows beyond each layer's
    true input width are REQUIRED by the kernel's stale-column invariant."""
    R = rnn_size
    P = max(R, _round_up(input_size, 128))       # lane-dense input width
    bound = 1.0 / np.sqrt(R)
    keys = jax.random.split(key, 4 * num_layers)

    def u(k, shape):
        return jax.random.uniform(k, shape, jnp.float32,
                                  minval=-bound, maxval=bound)

    w_blocks, b_blocks = [], []
    for i in range(num_layers):
        in_i = input_size if i == 0 else rnn_size
        w_ih = u(keys[4 * i + 0], (4 * R, in_i))
        w_hh = u(keys[4 * i + 1], (4 * R, R))
        b_ih = u(keys[4 * i + 2], (4 * R,))
        b_hh = u(keys[4 * i + 3], (4 * R,))
        w = jnp.zeros((R + P, 4 * R), jnp.float32)
        w = w.at[:R, :].set(w_hh.T)
        w = w.at[R:R + in_i, :].set(w_ih.T)
        w_blocks.append(w)
        b_blocks.append((b_ih + b_hh).reshape(1, 4 * R))

    w_all = jnp.stack(w_blocks).astype(w_dtype)       # (L, R+P, 4R) bf16
    b_all = jnp.stack(b_blocks).astype(jnp.float32)   # (L, 1, 4R)   f32
    return w_all, b_all


if __name__ == "__main__":
    num_layers = 2
    input_size = 128   # lane-dense (multiple of 128)
    rnn_size = 128     # lane-dense (multiple of 128)
    batch = 8          # demo size; raise toward >=128 to fill MXU rows
    # dropout = 0.0 -> identity (eval semantics)

    root = jax.random.PRNGKey(0)
    k_param, k_x, k_h, k_c = jax.random.split(root, 4)

    params = init_params(k_param, num_layers, input_size, rnn_size)
    x = jax.random.normal(k_x, (batch, input_size), jnp.float32)
    h0 = jax.random.normal(k_h, (num_layers, batch, rnn_size), jnp.float32)
    c0 = jax.random.normal(k_c, (num_layers, batch, rnn_size), jnp.float32)

    hout_exp, h1_exp, c1_exp = reference_forward(x, h0, c0, params)

    # Auto-selected path (fused single-step at this tiny config).
    hout, (h1, c1) = stacked_lstm_forward(x, h0, c0, params)
    jax.block_until_ready((hout, h1, c1))
    np.testing.assert_allclose(np.asarray(hout), np.asarray(hout_exp),
                               rtol=5e-3, atol=5e-3)
    np.testing.assert_allclose(np.asarray(h1), np.asarray(h1_exp),
                               rtol=5e-3, atol=5e-3)
    np.testing.assert_allclose(np.asarray(c1), np.asarray(c1_exp),
                               rtol=5e-3, atol=5e-3)

    # Also exercise the production (per-layer weight-streaming) path.
    hout_s, (h1_s, c1_s) = stacked_lstm_forward(x, h0, c0, params,
                                                force_path="streamed")
    jax.block_until_ready((hout_s, h1_s, c1_s))
    np.testing.assert_allclose(np.asarray(hout_s), np.asarray(hout_exp),
                               rtol=5e-3, atol=5e-3)
    np.testing.assert_allclose(np.asarray(h1_s), np.asarray(h1_exp),
                               rtol=5e-3, atol=5e-3)
    np.testing.assert_allclose(np.asarray(c1_s), np.asarray(c1_exp),
                               rtol=5e-3, atol=5e-3)

    print("KERNEL_OK")
</pallas_src>

<mosaic_0001>
module attributes {stable_mosaic.version = 11 : i64} {
  func.func @_stacked_lstm_fused_kernel(%arg0: i32, %arg1: memref<8x128xf32, #tpu.memory_space<vmem>>, %arg2: memref<2x8x128xf32, #tpu.memory_space<vmem>>, %arg3: memref<2x8x128xf32, #tpu.memory_space<vmem>>, %arg4: memref<2x256x512xbf16, #tpu.memory_space<vmem>>, %arg5: memref<2x1x512xf32, #tpu.memory_space<vmem>>, %arg6: memref<2x8x128xf32, #tpu.memory_space<vmem>>, %arg7: memref<2x8x128xf32, #tpu.memory_space<vmem>>, %arg8: memref<8x256xbf16, #tpu.memory_space<vmem>>) attributes {dimension_semantics = [#tpu.dimension_semantics<arbitrary>], iteration_bounds = array<i64: 1>, scalar_prefetch = 0 : i64, scratch_operands = 1 : i64, tpu.core_type = #tpu.core_type<tc>, window_params = [{pipeline_mode = #tpu.pipeline_mode<synchronous>, transform_indices = @transform_0, window_bounds = array<i64: 8, 128>}, {pipeline_mode = #tpu.pipeline_mode<synchronous>, transform_indices = @transform_1, window_bounds = array<i64: 2, 8, 128>}, {pipeline_mode = #tpu.pipeline_mode<synchronous>, transform_indices = @transform_2, window_bounds = array<i64: 2, 8, 128>}, {pipeline_mode = #tpu.pipeline_mode<synchronous>, transform_indices = @transform_3, window_bounds = array<i64: 2, 256, 512>}, {pipeline_mode = #tpu.pipeline_mode<synchronous>, transform_indices = @transform_4, window_bounds = array<i64: 2, 1, 512>}, {pipeline_mode = #tpu.pipeline_mode<synchronous>, transform_indices = @transform_5, window_bounds = array<i64: 2, 8, 128>}, {pipeline_mode = #tpu.pipeline_mode<synchronous>, transform_indices = @transform_6, window_bounds = array<i64: 2, 8, 128>}]} {
    %c0 = arith.constant 0 : index
    %c0_0 = arith.constant 0 : index
    %0 = vector.load %arg1[%c0, %c0_0] : memref<8x128xf32, #tpu.memory_space<vmem>>, vector<8x128xf32>
    %1 = arith.truncf %0 : vector<8x128xf32> to vector<8x128xbf16>
    %c0_1 = arith.constant 0 : index
    %c128 = arith.constant 128 : index
    %2 = vector.load %arg8[%c0_1, %c128] : memref<8x256xbf16, #tpu.memory_space<vmem>>, vector<8x128xbf16>
    tpu.vector_store %arg8[%c0_1, %c128], %1 {strides = array<i32>} : memref<8x256xbf16, #tpu.memory_space<vmem>>, vector<8x128xbf16>,
    %c0_2 = arith.constant 0 : index
    %c0_3 = arith.constant 0 : index
    %c0_4 = arith.constant 0 : index
    %3 = vector.load %arg2[%c0_2, %c0_3, %c0_4] : memref<2x8x128xf32, #tpu.memory_space<vmem>>, vector<1x8x128xf32>
    %4 = vector.shape_cast %3 : vector<1x8x128xf32> to vector<8x128xf32>
    %5 = arith.truncf %4 : vector<8x128xf32> to vector<8x128xbf16>
    %c0_5 = arith.constant 0 : index
    %c0_6 = arith.constant 0 : index
    %6 = vector.load %arg8[%c0_5, %c0_6] : memref<8x256xbf16, #tpu.memory_space<vmem>>, vector<8x128xbf16>
    tpu.vector_store %arg8[%c0_5, %c0_6], %5 {strides = array<i32>} : memref<8x256xbf16, #tpu.memory_space<vmem>>, vector<8x128xbf16>,
    %c0_7 = arith.constant 0 : index
    %c0_8 = arith.constant 0 : index
    %7 = vector.load %arg8[%c0_7, %c0_8] : memref<8x256xbf16, #tpu.memory_space<vmem>>, vector<8x256xbf16>
    %c0_9 = arith.constant 0 : index
    %c0_10 = arith.constant 0 : index
    %c0_11 = arith.constant 0 : index
    %8 = vector.load %arg4[%c0_9, %c0_10, %c0_11] : memref<2x256x512xbf16, #tpu.memory_space<vmem>>, vector<1x256x512xbf16>
    %9 = vector.shape_cast %8 : vector<1x256x512xbf16> to vector<256x512xbf16>
    %cst = arith.constant dense<0.000000e+00> : vector<8x512xf32>
    %10 = tpu.matmul %7, %9, %cst {dimension_numbers = #tpu.dot_dimension_numbers<[1], [0], [0], [1], [0, 0, 1, 1], [], []>} : vector<8x256xbf16>, vector<256x512xbf16>, vector<8x512xf32> -> vector<8x512xf32>
    %c0_12 = arith.constant 0 : index
    %c0_13 = arith.constant 0 : index
    %c0_14 = arith.constant 0 : index
    %11 = vector.load %arg5[%c0_12, %c0_13, %c0_14] : memref<2x1x512xf32, #tpu.memory_space<vmem>>, vector<1x1x512xf32>
    %12 = vector.shape_cast %11 : vector<1x1x512xf32> to vector<1x512xf32>
    %13 = vector.broadcast %12 : vector<1x512xf32> to vector<8x512xf32>
    %14 = arith.addf %10, %13 : vector<8x512xf32>
    %c0_15 = arith.constant 0 : index
    %c0_16 = arith.constant 0 : index
    %c0_17 = arith.constant 0 : index
    %15 = vector.load %arg3[%c0_15, %c0_16, %c0_17] : memref<2x8x128xf32, #tpu.memory_space<vmem>>, vector<1x8x128xf32>
    %16 = vector.shape_cast %15 : vector<1x8x128xf32> to vector<8x128xf32>
    %17 = vector.extract_strided_slice %14 {offsets = [0, 0], sizes = [8, 128], strides = [1, 1]} : vector<8x512xf32> to vector<8x128xf32>
    %18 = arith.negf %17 : vector<8x128xf32>
    %19 = math.exp %18 : vector<8x128xf32>
    %cst_18 = arith.constant 1.000000e+00 : f32
    %20 = vector.broadcast %cst_18 : f32 to vector<8x128xf32>
    %21 = arith.addf %20, %19 : vector<8x128xf32>
    %22 = arith.divf %20, %21 : vector<8x128xf32>
    %23 = vector.extract_strided_slice %14 {offsets = [0, 128], sizes = [8, 128], strides = [1, 1]} : vector<8x512xf32> to vector<8x128xf32>
    %24 = arith.negf %23 : vector<8x128xf32>
    %25 = math.exp %24 : vector<8x128xf32>
    %cst_19 = arith.constant 1.000000e+00 : f32
    %26 = vector.broadcast %cst_19 : f32 to vector<8x128xf32>
    %27 = arith.addf %26, %25 : vector<8x128xf32>
    %28 = arith.divf %26, %27 : vector<8x128xf32>
    %29 = vector.extract_strided_slice %14 {offsets = [0, 256], sizes = [8, 128], strides = [1, 1]} : vector<8x512xf32> to vector<8x128xf32>
    %30 = math.tanh %29 : vector<8x128xf32>
    %31 = vector.extract_strided_slice %14 {offsets = [0, 384], sizes = [8, 128], strides = [1, 1]} : vector<8x512xf32> to vector<8x128xf32>
    %32 = arith.negf %31 : vector<8x128xf32>
    %33 = math.exp %32 : vector<8x128xf32>
    %cst_20 = arith.constant 1.000000e+00 : f32
    %34 = vector.broadcast %cst_20 : f32 to vector<8x128xf32>
    %35 = arith.addf %34, %33 : vector<8x128xf32>
    %36 = arith.divf %34, %35 : vector<8x128xf32>
    %37 = arith.mulf %28, %16 : vector<8x128xf32>
    %38 = arith.mulf %22, %30 : vector<8x128xf32>
    %39 = arith.addf %37, %38 : vector<8x128xf32>
    %40 = math.tanh %39 : vector<8x128xf32>
    %41 = arith.mulf %36, %40 : vector<8x128xf32>
    %c0_21 = arith.constant 0 : index
    %c0_22 = arith.constant 0 : index
    %c0_23 = arith.constant 0 : index
    %42 = vector.load %arg6[%c0_21, %c0_22, %c0_23] : memref<2x8x128xf32, #tpu.memory_space<vmem>>, vector<1x8x128xf32>
    %43 = vector.shape_cast %42 : vector<1x8x128xf32> to vector<8x128xf32>
    %44 = vector.shape_cast %41 : vector<8x128xf32> to vector<1x8x128xf32>
    tpu.vector_store %arg6[%c0_21, %c0_22, %c0_23], %44 {strides = array<i32>} : memref<2x8x128xf32, #tpu.memory_space<vmem>>, vector<1x8x128xf32>,
    %c0_24 = arith.constant 0 : index
    %c0_25 = arith.constant 0 : index
    %c0_26 = arith.constant 0 : index
    %45 = vector.load %arg7[%c0_24, %c0_25, %c0_26] : memref<2x8x128xf32, #tpu.memory_space<vmem>>, vector<1x8x128xf32>
    %46 = vector.shape_cast %45 : vector<1x8x128xf32> to vector<8x128xf32>
    %47 = vector.shape_cast %39 : vector<8x128xf32> to vector<1x8x128xf32>
    tpu.vector_store %arg7[%c0_24, %c0_25, %c0_26], %47 {strides = array<i32>} : memref<2x8x128xf32, #tpu.memory_space<vmem>>, vector<1x8x128xf32>,
    %48 = arith.truncf %41 : vector<8x128xf32> to vector<8x128xbf16>
    %c0_27 = arith.constant 0 : index
    %c128_28 = arith.constant 128 : index
    %49 = vector.load %arg8[%c0_27, %c128_28] : memref<8x256xbf16, #tpu.memory_space<vmem>>, vector<8x128xbf16>
    tpu.vector_store %arg8[%c0_27, %c128_28], %48 {strides = array<i32>} : memref<8x256xbf16, #tpu.memory_space<vmem>>, vector<8x128xbf16>,
    %c1 = arith.constant 1 : index
    %c0_29 = arith.constant 0 : index
    %c0_30 = arith.constant 0 : index
    %50 = vector.load %arg2[%c1, %c0_29, %c0_30] : memref<2x8x128xf32, #tpu.memory_space<vmem>>, vector<1x8x128xf32>
    %51 = vector.shape_cast %50 : vector<1x8x128xf32> to vector<8x128xf32>
    %52 = arith.truncf %51 : vector<8x128xf32> to vector<8x128xbf16>
    %c0_31 = arith.constant 0 : index
    %c0_32 = arith.constant 0 : index
    %53 = vector.load %arg8[%c0_31, %c0_32] : memref<8x256xbf16, #tpu.memory_space<vmem>>, vector<8x128xbf16>
    tpu.vector_store %arg8[%c0_31, %c0_32], %52 {strides = array<i32>} : memref<8x256xbf16, #tpu.memory_space<vmem>>, vector<8x128xbf16>,
    %c0_33 = arith.constant 0 : index
    %c0_34 = arith.constant 0 : index
    %54 = vector.load %arg8[%c0_33, %c0_34] : memref<8x256xbf16, #tpu.memory_space<vmem>>, vector<8x256xbf16>
    %c1_35 = arith.constant 1 : index
    %c0_36 = arith.constant 0 : index
    %c0_37 = arith.constant 0 : index
    %55 = vector.load %arg4[%c1_35, %c0_36, %c0_37] : memref<2x256x512xbf16, #tpu.memory_space<vmem>>, vector<1x256x512xbf16>
    %56 = vector.shape_cast %55 : vector<1x256x512xbf16> to vector<256x512xbf16>
    %cst_38 = arith.constant dense<0.000000e+00> : vector<8x512xf32>
    %57 = tpu.matmul %54, %56, %cst_38 {dimension_numbers = #tpu.dot_dimension_numbers<[1], [0], [0], [1], [0, 0, 1, 1], [], []>} : vector<8x256xbf16>, vector<256x512xbf16>, vector<8x512xf32> -> vector<8x512xf32>
    %c1_39 = arith.constant 1 : index
    %c0_40 = arith.constant 0 : index
    %c0_41 = arith.constant 0 : index
    %58 = vector.load %arg5[%c1_39, %c0_40, %c0_41] : memref<2x1x512xf32, #tpu.memory_space<vmem>>, vector<1x1x512xf32>
    %59 = vector.shape_cast %58 : vector<1x1x512xf32> to vector<1x512xf32>
    %60 = vector.broadcast %59 : vector<1x512xf32> to vector<8x512xf32>
    %61 = arith.addf %57, %60 : vector<8x512xf32>
    %c1_42 = arith.constant 1 : index
    %c0_43 = arith.constant 0 : index
    %c0_44 = arith.constant 0 : index
    %62 = vector.load %arg3[%c1_42, %c0_43, %c0_44] : memref<2x8x128xf32, #tpu.memory_space<vmem>>, vector<1x8x128xf32>
    %63 = vector.shape_cast %62 : vector<1x8x128xf32> to vector<8x128xf32>
    %64 = vector.extract_strided_slice %61 {offsets = [0, 0], sizes = [8, 128], strides = [1, 1]} : vector<8x512xf32> to vector<8x128xf32>
    %65 = arith.negf %64 : vector<8x128xf32>
    %66 = math.exp %65 : vector<8x128xf32>
    %cst_45 = arith.constant 1.000000e+00 : f32
    %67 = vector.broadcast %cst_45 : f32 to vector<8x128xf32>
    %68 = arith.addf %67, %66 : vector<8x128xf32>
    %69 = arith.divf %67, %68 : vector<8x128xf32>
    %70 = vector.extract_strided_slice %61 {offsets = [0, 128], sizes = [8, 128], strides = [1, 1]} : vector<8x512xf32> to vector<8x128xf32>
    %71 = arith.negf %70 : vector<8x128xf32>
    %72 = math.exp %71 : vector<8x128xf32>
    %cst_46 = arith.constant 1.000000e+00 : f32
    %73 = vector.broadcast %cst_46 : f32 to vector<8x128xf32>
    %74 = arith.addf %73, %72 : vector<8x128xf32>
    %75 = arith.divf %73, %74 : vector<8x128xf32>
    %76 = vector.extract_strided_slice %61 {offsets = [0, 256], sizes = [8, 128], strides = [1, 1]} : vector<8x512xf32> to vector<8x128xf32>
    %77 = math.tanh %76 : vector<8x128xf32>
    %78 = vector.extract_strided_slice %61 {offsets = [0, 384], sizes = [8, 128], strides = [1, 1]} : vector<8x512xf32> to vector<8x128xf32>
    %79 = arith.negf %78 : vector<8x128xf32>
    %80 = math.exp %79 : vector<8x128xf32>
    %cst_47 = arith.constant 1.000000e+00 : f32
    %81 = vector.broadcast %cst_47 : f32 to vector<8x128xf32>
    %82 = arith.addf %81, %80 : vector<8x128xf32>
    %83 = arith.divf %81, %82 : vector<8x128xf32>
    %84 = arith.mulf %75, %63 : vector<8x128xf32>
    %85 = arith.mulf %69, %77 : vector<8x128xf32>
    %86 = arith.addf %84, %85 : vector<8x128xf32>
    %87 = math.tanh %86 : vector<8x128xf32>
    %88 = arith.mulf %83, %87 : vector<8x128xf32>
    %c1_48 = arith.constant 1 : index
    %c0_49 = arith.constant 0 : index
    %c0_50 = arith.constant 0 : index
    %89 = vector.load %arg6[%c1_48, %c0_49, %c0_50] : memref<2x8x128xf32, #tpu.memory_space<vmem>>, vector<1x8x128xf32>
    %90 = vector.shape_cast %89 : vector<1x8x128xf32> to vector<8x128xf32>
    %91 = vector.shape_cast %88 : vector<8x128xf32> to vector<1x8x128xf32>
    tpu.vector_store %arg6[%c1_48, %c0_49, %c0_50], %91 {strides = array<i32>} : memref<2x8x128xf32, #tpu.memory_space<vmem>>, vector<1x8x128xf32>,
    %c1_51 = arith.constant 1 : index
    %c0_52 = arith.constant 0 : index
    %c0_53 = arith.constant 0 : index
    %92 = vector.load %arg7[%c1_51, %c0_52, %c0_53] : memref<2x8x128xf32, #tpu.memory_space<vmem>>, vector<1x8x128xf32>
    %93 = vector.shape_cast %92 : vector<1x8x128xf32> to vector<8x128xf32>
    %94 = vector.shape_cast %86 : vector<8x128xf32> to vector<1x8x128xf32>
    tpu.vector_store %arg7[%c1_51, %c0_52, %c0_53], %94 {strides = array<i32>} : memref<2x8x128xf32, #tpu.memory_space<vmem>>, vector<1x8x128xf32>,
    %95 = arith.truncf %88 : vector<8x128xf32> to vector<8x128xbf16>
    %c0_54 = arith.constant 0 : index
    %c128_55 = arith.constant 128 : index
    %96 = vector.load %arg8[%c0_54, %c128_55] : memref<8x256xbf16, #tpu.memory_space<vmem>>, vector<8x128xbf16>
    tpu.vector_store %arg8[%c0_54, %c128_55], %95 {strides = array<i32>} : memref<8x256xbf16, #tpu.memory_space<vmem>>, vector<8x128xbf16>,
    return
  }
  func.func @transform_0(%arg0: i32) -> (i32, i32) {
    %c0_i32 = arith.constant 0 : i32
    %c0_i32_0 = arith.constant 0 : i32
    %c0_i32_1 = arith.constant 0 : i32
    return %c0_i32, %c0_i32_0 : i32, i32
  }
  func.func @transform_1(%arg0: i32) -> (i32, i32, i32) {
    %c0_i32 = arith.constant 0 : i32
    %c0_i32_0 = arith.constant 0 : i32
    %c0_i32_1 = arith.constant 0 : i32
    %c0_i32_2 = arith.constant 0 : i32
    return %c0_i32, %c0_i32_0, %c0_i32_1 : i32, i32, i32
  }
  func.func @transform_2(%arg0: i32) -> (i32, i32, i32) {
    %c0_i32 = arith.constant 0 : i32
    %c0_i32_0 = arith.constant 0 : i32
    %c0_i32_1 = arith.constant 0 : i32
    %c0_i32_2 = arith.constant 0 : i32
    return %c0_i32, %c0_i32_0, %c0_i32_1 : i32, i32, i32
  }
  func.func @transform_3(%arg0: i32) -> (i32, i32, i32) {
    %c0_i32 = arith.constant 0 : i32
    %c0_i32_0 = arith.constant 0 : i32
    %c0_i32_1 = arith.constant 0 : i32
    %c0_i32_2 = arith.constant 0 : i32
    return %c0_i32, %c0_i32_0, %c0_i32_1 : i32, i32, i32
  }
  func.func @transform_4(%arg0: i32) -> (i32, i32, i32) {
    %c0_i32 = arith.constant 0 : i32
    %c0_i32_0 = arith.constant 0 : i32
    %c0_i32_1 = arith.constant 0 : i32
    %c0_i32_2 = arith.constant 0 : i32
    return %c0_i32, %c0_i32_0, %c0_i32_1 : i32, i32, i32
  }
  func.func @transform_5(%arg0: i32) -> (i32, i32, i32) {
    %c0_i32 = arith.constant 0 : i32
    %c0_i32_0 = arith.constant 0 : i32
    %c0_i32_1 = arith.constant 0 : i32
    %c0_i32_2 = arith.constant 0 : i32
    return %c0_i32, %c0_i32_0, %c0_i32_1 : i32, i32, i32
  }
  func.func @transform_6(%arg0: i32) -> (i32, i32, i32) {
    %c0_i32 = arith.constant 0 : i32
    %c0_i32_0 = arith.constant 0 : i32
    %c0_i32_1 = arith.constant 0 : i32
    %c0_i32_2 = arith.constant 0 : i32
    return %c0_i32, %c0_i32_0, %c0_i32_1 : i32, i32, i32
  }
}

</mosaic_0001>

<llo_original>
// kernel: tpu_custom_call.1
$region0: #{tpu_custom_call.1}
  #allocation0 [shape = 'u32[]', space=smem, size = 0x4, offset = 0x4, fixed_abs, tag = 'smem constant byte address 0x4 - core index']
  #allocation1 [shape = 'u32[144,128]{1,0:T(1,128)}', space=vmem, size = 0x12000, scoped, tag = 'internal scratch']
  #allocation2 [shape = 'bf16[8,256]{1,0:T(8,128)(2,1)}', space=vmem, size = 0x1000, scoped, tag = 'scratch operand']
  %s0 = inlined_call_operand.hbm [shape: f32[8,128], index: 0, kind: input, shape index: {}]
  %s1 = inlined_call_operand.hbm [shape: f32[2,8,128], index: 1, kind: input, shape index: {}]
  %s2 = inlined_call_operand.hbm [shape: f32[2,8,128], index: 2, kind: input, shape index: {}]
  %s3 = inlined_call_operand.hbm [shape: bf16[2,256,512], index: 3, kind: input, shape index: {}]
  %s4 = inlined_call_operand.vmem [shape: f32[2,1,512], index: 4, kind: input, shape index: {}]
  %s5 = inlined_call_operand.hbm [shape: f32[2,8,128], index: 5, kind: output, shape index: {0}]
  %s6 = inlined_call_operand.hbm [shape: f32[2,8,128], index: 6, kind: output, shape index: {1}]
  %7 = xla_tuple %s5, %s6
  %s8 = sld [smem:[#allocation0]]
  $region54: #{tpu_custom_call.1} parent=0
    _
  %s10 = ssub.s32 1, %s8
  %s11 = scalar_select 0, %s10, %s8
  $region1: #{tpu_custom_call.1} parent=0
    #allocation3 [shape = 'u8[4096]{0}', space=vmem, size = 0x1000, scoped, tag = 'input window, operand 0, single buffered']
    #allocation4 [shape = 's32[1]{0}', space=sflag, size = 0x4, scoped, tag = 'scoped memory for tpu_custom_call.1']
    #allocation5 [shape = 's32[1]{0}', space=sflag, size = 0x4, scoped, tag = 'scoped memory for tpu_custom_call.1']
    #allocation6 [shape = 'u8[8192]{0}', space=vmem, size = 0x2000, scoped, tag = 'input window, operand 1, single buffered']
    #allocation7 [shape = 's32[1]{0}', space=sflag, size = 0x4, scoped, tag = 'scoped memory for tpu_custom_call.1']
    #allocation8 [shape = 'u8[8192]{0}', space=vmem, size = 0x2000, scoped, tag = 'input window, operand 2, single buffered']
    #allocation9 [shape = 'u8[524288]{0}', space=vmem, size = 0x80000, scoped, tag = 'input window, operand 3, single buffered']
    #allocation10 [shape = 's32[1]{0}', space=sflag, size = 0x4, scoped, tag = 'scoped memory for tpu_custom_call.1']
    #allocation11 [shape = 'u8[8192]{0}', space=vmem, size = 0x2000, scoped, tag = 'output window, operand 0, single buffered']
    #allocation12 [shape = 'u8[8192]{0}', space=vmem, size = 0x2000, scoped, tag = 'output window, operand 1, single buffered']
    #allocation13 [shape = 's32[1]{0}', space=sflag, size = 0x4, scoped, tag = 'scoped memory for tpu_custom_call.1']
    %12 = vsyncpa [#allocation4], 0
    %13 = vsyncpa [#allocation7], 0
    %14 = vsyncpa [#allocation10], 0
    %15 = vsyncpa [#allocation5], 0
    %16 = vsyncpa [#allocation13], 0
    // Predicated region
    $region2: #{tpu_custom_call.1} parent=1 // pred_check
      _
    $region3: #{tpu_custom_call.1} parent=1 // pred_check_branch
      %18 = sbr.rel (0) target = $region5
    $region4: #{tpu_custom_call.1} parent=1 // pred_region
      %s20 = ssub.s32 128, 128
      %21 = vsyncadd [#allocation4], %s20
      %s23 = sshll.u32 [#allocation3], 4
      %s24 = int_to_ptr.vmem [resolvable:$true] %s23
      %26 = dma.hbm_to_vmem [thread:$0]  %s0, 128, %s24, [#allocation4]
    $region5: #{tpu_custom_call.1} parent=1 // pred_fallthru
      _
    // Predicated region
    $region6: #{tpu_custom_call.1} parent=1 // pred_check
      _
    $region7: #{tpu_custom_call.1} parent=1 // pred_check_branch
      %28 = sbr.rel (0) target = $region9
    $region8: #{tpu_custom_call.1} parent=1 // pred_region
      %s30 = ssub.s32 256, 256
      %31 = vsyncadd [#allocation7], %s30
      %s32 = sshll.u32 [#allocation6], 4
      %s33 = int_to_ptr.vmem [resolvable:$true] %s32
      %38 = dma.hbm_to_vmem [thread:$0]  %s1, 256, %s33, [#allocation7], 128, 128, 8
    $region9: #{tpu_custom_call.1} parent=1 // pred_fallthru
      _
    // Predicated region
    $region10: #{tpu_custom_call.1} parent=1 // pred_check
      _
    $region11: #{tpu_custom_call.1} parent=1 // pred_check_branch
      %40 = sbr.rel (0) target = $region13
    $region12: #{tpu_custom_call.1} parent=1 // pred_region
      %s42 = ssub.s32 256, 256
      %43 = vsyncadd [#allocation7], %s42
      %s44 = sshll.u32 [#allocation8], 4
      %s45 = int_to_ptr.vmem [resolvable:$true] %s44
      %50 = dma.hbm_to_vmem [thread:$0]  %s2, 256, %s45, [#allocation7], 128, 128, 8
    $region13: #{tpu_custom_call.1} parent=1 // pred_fallthru
      _
    // Predicated region
    $region14: #{tpu_custom_call.1} parent=1 // pred_check
      _
    $region15: #{tpu_custom_call.1} parent=1 // pred_check_branch
      %52 = sbr.rel (0) target = $region17
    $region16: #{tpu_custom_call.1} parent=1 // pred_region
      %s54 = ssub.s32 16384, 16384
      %55 = vsyncadd [#allocation10], %s54
      %s56 = sshll.u32 [#allocation9], 4
      %s57 = int_to_ptr.vmem [resolvable:$true] %s56
      %62 = dma.hbm_to_vmem [thread:$0]  %s3, 16384, %s57, [#allocation10], 256, 256, 16
    $region17: #{tpu_custom_call.1} parent=1 // pred_fallthru
      _
    // Predicated region
    $region18: #{tpu_custom_call.1} parent=1 // pred_check
      _
    $region19: #{tpu_custom_call.1} parent=1 // pred_check_branch
      %64 = sbr.rel (0) target = $region21
    $region20: #{tpu_custom_call.1} parent=1 // pred_region
      _
    $region21: #{tpu_custom_call.1} parent=1 // pred_fallthru
      _
    // Predicated region
    $region22: #{tpu_custom_call.1} parent=1 // pred_check
      _
    $region23: #{tpu_custom_call.1} parent=1 // pred_check_branch
      %66 = sbr.rel (0) target = $region25
    $region24: #{tpu_custom_call.1} parent=1 // pred_region
      %67 = dma.done [#allocation4], 128
    $region25: #{tpu_custom_call.1} parent=1 // pred_fallthru
      _
    // Predicated region
    $region26: #{tpu_custom_call.1} parent=1 // pred_check
      _
    $region27: #{tpu_custom_call.1} parent=1 // pred_check_branch
      %69 = sbr.rel (0) target = $region29
    $region28: #{tpu_custom_call.1} parent=1 // pred_region
      %70 = dma.done [#allocation7], 256
    $region29: #{tpu_custom_call.1} parent=1 // pred_fallthru
      _
    // Predicated region
    $region30: #{tpu_custom_call.1} parent=1 // pred_check
      _
    $region31: #{tpu_custom_call.1} parent=1 // pred_check_branch
      %72 = sbr.rel (0) target = $region33
    $region32: #{tpu_custom_call.1} parent=1 // pred_region
      %73 = dma.done [#allocation7], 256
    $region33: #{tpu_custom_call.1} parent=1 // pred_fallthru
      _
    // Predicated region
    $region34: #{tpu_custom_call.1} parent=1 // pred_check
      _
    $region35: #{tpu_custom_call.1} parent=1 // pred_check_branch
      %75 = sbr.rel (0) target = $region37
    $region36: #{tpu_custom_call.1} parent=1 // pred_region
      %76 = dma.done [#allocation10], 16384
    $region37: #{tpu_custom_call.1} parent=1 // pred_fallthru
      _
    %v77 = vld [vmem:[#allocation3] sm:$0xff]
    %v78 = vpack.c.bf16 %v77, %v77
    %79 = vst [vmem:[#allocation2 + $0x4] sm:$0xf] %v78
    %v80 = vld [vmem:[#allocation6] sm:$0xff]
    %v81 = vpack.c.bf16 %v80, %v80
    %82 = vst [vmem:[#allocation2] sm:$0xf] %v81
    %v83 = vld [vmem:[#allocation2] sm:$0xff]
    %v84 = vld [vmem:[#allocation9] sm:$0xff]
    %v85 = vld [vmem:[#allocation9 + $0x8] sm:$0xff]
    %v86 = vld [vmem:[#allocation9 + $0x10] sm:$0xff]
    %v87 = vld [vmem:[#allocation9 + $0x18] sm:$0xff]
    %v88 = vld [vmem:[#allocation9 + $0x20] sm:$0xff]
    %v89 = vld [vmem:[#allocation9 + $0x28] sm:$0xff]
    %v90 = vld [vmem:[#allocation9 + $0x30] sm:$0xff]
    %v91 = vld [vmem:[#allocation9 + $0x38] sm:$0xff]
    %v92 = vld [vmem:[#allocation9 + $0x40] sm:$0xff]
    %v93 = vld [vmem:[#allocation9 + $0x48] sm:$0xff]
    %v94 = vld [vmem:[#allocation9 + $0x50] sm:$0xff]
    %v95 = vld [vmem:[#allocation9 + $0x58] sm:$0xff]
    %v96 = vld [vmem:[#allocation9 + $0x60] sm:$0xff]
    %v97 = vld [vmem:[#allocation9 + $0x68] sm:$0xff]
    %v98 = vld [vmem:[#allocation9 + $0x70] sm:$0xff]
    %v99 = vld [vmem:[#allocation9 + $0x78] sm:$0xff]
    %v100 = vld [vmem:[#allocation9 + $0x80] sm:$0xff]
    %v101 = vld [vmem:[#allocation9 + $0x88] sm:$0xff]
    %v102 = vld [vmem:[#allocation9 + $0x90] sm:$0xff]
    %v103 = vld [vmem:[#allocation9 + $0x98] sm:$0xff]
    %v104 = vld [vmem:[#allocation9 + $0xa0] sm:$0xff]
    %v105 = vld [vmem:[#allocation9 + $0xa8] sm:$0xff]
    %v106 = vld [vmem:[#allocation9 + $0xb0] sm:$0xff]
    %v107 = vld [vmem:[#allocation9 + $0xb8] sm:$0xff]
    %v108 = vld [vmem:[#allocation9 + $0xc0] sm:$0xff]
    %v109 = vld [vmem:[#allocation9 + $0xc8] sm:$0xff]
    %v110 = vld [vmem:[#allocation9 + $0xd0] sm:$0xff]
    %v111 = vld [vmem:[#allocation9 + $0xd8] sm:$0xff]
    %v112 = vld [vmem:[#allocation9 + $0xe0] sm:$0xff]
    %v113 = vld [vmem:[#allocation9 + $0xe8] sm:$0xff]
    %v114 = vld [vmem:[#allocation9 + $0xf0] sm:$0xff]
    %v115 = vld [vmem:[#allocation9 + $0xf8] sm:$0xff]
    %v116 = vld [vmem:[#allocation9 + $0x100] sm:$0xff]
    %v117 = vld [vmem:[#allocation9 + $0x108] sm:$0xff]
    %v118 = vld [vmem:[#allocation9 + $0x110] sm:$0xff]
    %v119 = vld [vmem:[#allocation9 + $0x118] sm:$0xff]
    %v120 = vld [vmem:[#allocation9 + $0x120] sm:$0xff]
    %v121 = vld [vmem:[#allocation9 + $0x128] sm:$0xff]
    %v122 = vld [vmem:[#allocation9 + $0x130] sm:$0xff]
    %v123 = vld [vmem:[#allocation9 + $0x138] sm:$0xff]
    %v124 = vld [vmem:[#allocation9 + $0x140] sm:$0xff]
    %v125 = vld [vmem:[#allocation9 + $0x148] sm:$0xff]
    %v126 = vld [vmem:[#allocation9 + $0x150] sm:$0xff]
    %v127 = vld [vmem:[#allocation9 + $0x158] sm:$0xff]
    %v128 = vld [vmem:[#allocation9 + $0x160] sm:$0xff]
    %v129 = vld [vmem:[#allocation9 + $0x168] sm:$0xff]
    %v130 = vld [vmem:[#allocation9 + $0x170] sm:$0xff]
    %v131 = vld [vmem:[#allocation9 + $0x178] sm:$0xff]
    %v132 = vld [vmem:[#allocation9 + $0x180] sm:$0xff]
    %v133 = vld [vmem:[#allocation9 + $0x188] sm:$0xff]
    %v134 = vld [vmem:[#allocation9 + $0x190] sm:$0xff]
    %v135 = vld [vmem:[#allocation9 + $0x198] sm:$0xff]
    %v136 = vld [vmem:[#allocation9 + $0x1a0] sm:$0xff]
    %v137 = vld [vmem:[#allocation9 + $0x1a8] sm:$0xff]
    %v138 = vld [vmem:[#allocation9 + $0x1b0] sm:$0xff]
    %v139 = vld [vmem:[#allocation9 + $0x1b8] sm:$0xff]
    %v140 = vld [vmem:[#allocation9 + $0x1c0] sm:$0xff]
    %v141 = vld [vmem:[#allocation9 + $0x1c8] sm:$0xff]
    %v142 = vld [vmem:[#allocation9 + $0x1d0] sm:$0xff]
    %v143 = vld [vmem:[#allocation9 + $0x1d8] sm:$0xff]
    %v144 = vld [vmem:[#allocation9 + $0x1e0] sm:$0xff]
    %v145 = vld [vmem:[#allocation9 + $0x1e8] sm:$0xff]
    %v146 = vld [vmem:[#allocation9 + $0x1f0] sm:$0xff]
    %v147 = vld [vmem:[#allocation9 + $0x1f8] sm:$0xff]
    %v148 = vld [vmem:[%s4] sm:$0xf]
    %v150 = vlaneseq
    %v151 = vshrl.u32 %v150, 7
    %v152 = vsub.s32 0, %v151
    %v153 = vrot.slane %v148, %v152
    %v154 = vlaneseq
    %v155 = vshrl.u32 %v154, 7
    %v156 = vsub.s32 1, %v155
    %v157 = vrot.slane %v148, %v156
    %v158 = vlaneseq
    %v159 = vshrl.u32 %v158, 7
    %v160 = vsub.s32 2, %v159
    %v161 = vrot.slane %v148, %v160
    %v162 = vlaneseq
    %v163 = vshrl.u32 %v162, 7
    %v164 = vsub.s32 3, %v163
    %v165 = vrot.slane %v148, %v164
    %v171 = vunpack.c.l.b16 %v83
    %v172 = vunpack.c.h.b16 %v83
    %v173 = vpack.c.b16 %v171, %v171
    %v174 = vpack.c.b16 %v172, %v172
    %v241 = vunpack.c.l.b16 %v84
    %v242 = vunpack.c.h.b16 %v84
    %v243 = vunpack.c.l.b16 %v85
    %v244 = vunpack.c.h.b16 %v85
    %v245 = vunpack.c.l.b16 %v86
    %v246 = vunpack.c.h.b16 %v86
    %v247 = vunpack.c.l.b16 %v87
    %v248 = vunpack.c.h.b16 %v87
    %v249 = vunpack.c.l.b16 %v88
    %v250 = vunpack.c.h.b16 %v88
    %v251 = vunpack.c.l.b16 %v89
    %v252 = vunpack.c.h.b16 %v89
    %v253 = vunpack.c.l.b16 %v90
    %v254 = vunpack.c.h.b16 %v90
    %v255 = vunpack.c.l.b16 %v91
    %v256 = vunpack.c.h.b16 %v91
    %v257 = vunpack.c.l.b16 %v92
    %v258 = vunpack.c.h.b16 %v92
    %v259 = vunpack.c.l.b16 %v93
    %v260 = vunpack.c.h.b16 %v93
    %v261 = vunpack.c.l.b16 %v94
    %v262 = vunpack.c.h.b16 %v94
    %v263 = vunpack.c.l.b16 %v95
    %v264 = vunpack.c.h.b16 %v95
    %v265 = vunpack.c.l.b16 %v96
    %v266 = vunpack.c.h.b16 %v96
    %v267 = vunpack.c.l.b16 %v97
    %v268 = vunpack.c.h.b16 %v97
    %v269 = vunpack.c.l.b16 %v98
    %v270 = vunpack.c.h.b16 %v98
    %v271 = vunpack.c.l.b16 %v99
    %v272 = vunpack.c.h.b16 %v99
    %v273 = vunpack.c.l.b16 %v100
    %v274 = vunpack.c.h.b16 %v100
    %v275 = vunpack.c.l.b16 %v101
    %v276 = vunpack.c.h.b16 %v101
    %v277 = vunpack.c.l.b16 %v102
    %v278 = vunpack.c.h.b16 %v102
    %v279 = vunpack.c.l.b16 %v103
    %v280 = vunpack.c.h.b16 %v103
    %v281 = vunpack.c.l.b16 %v104
    %v282 = vunpack.c.h.b16 %v104
    %v283 = vunpack.c.l.b16 %v105
    %v284 = vunpack.c.h.b16 %v105
    %v285 = vunpack.c.l.b16 %v106
    %v286 = vunpack.c.h.b16 %v106
    %v287 = vunpack.c.l.b16 %v107
    %v288 = vunpack.c.h.b16 %v107
    %v289 = vunpack.c.l.b16 %v108
    %v290 = vunpack.c.h.b16 %v108
    %v291 = vunpack.c.l.b16 %v109
    %v292 = vunpack.c.h.b16 %v109
    %v293 = vunpack.c.l.b16 %v110
    %v294 = vunpack.c.h.b16 %v110
    %v295 = vunpack.c.l.b16 %v111
    %v296 = vunpack.c.h.b16 %v111
    %v297 = vunpack.c.l.b16 %v112
    %v298 = vunpack.c.h.b16 %v112
    %v299 = vunpack.c.l.b16 %v113
    %v300 = vunpack.c.h.b16 %v113
    %v301 = vunpack.c.l.b16 %v114
    %v302 = vunpack.c.h.b16 %v114
    %v303 = vunpack.c.l.b16 %v115
    %v304 = vunpack.c.h.b16 %v115
    %v305 = vunpack.c.l.b16 %v116
    %v306 = vunpack.c.h.b16 %v116
    %v307 = vunpack.c.l.b16 %v117
    %v308 = vunpack.c.h.b16 %v117
    %v309 = vunpack.c.l.b16 %v118
    %v310 = vunpack.c.h.b16 %v118
    %v311 = vunpack.c.l.b16 %v119
    %v312 = vunpack.c.h.b16 %v119
    %v313 = vunpack.c.l.b16 %v120
    %v314 = vunpack.c.h.b16 %v120
    %v315 = vunpack.c.l.b16 %v121
    %v316 = vunpack.c.h.b16 %v121
    %v317 = vunpack.c.l.b16 %v122
    %v318 = vunpack.c.h.b16 %v122
    %v319 = vunpack.c.l.b16 %v123
    %v320 = vunpack.c.h.b16 %v123
    %v321 = vunpack.c.l.b16 %v124
    %v322 = vunpack.c.h.b16 %v124
    %v323 = vunpack.c.l.b16 %v125
    %v324 = vunpack.c.h.b16 %v125
    %v325 = vunpack.c.l.b16 %v126
    %v326 = vunpack.c.h.b16 %v126
    %v327 = vunpack.c.l.b16 %v127
    %v328 = vunpack.c.h.b16 %v127
    %v329 = vunpack.c.l.b16 %v128
    %v330 = vunpack.c.h.b16 %v128
    %v331 = vunpack.c.l.b16 %v129
    %v332 = vunpack.c.h.b16 %v129
    %v333 = vunpack.c.l.b16 %v130
    %v334 = vunpack.c.h.b16 %v130
    %v335 = vunpack.c.l.b16 %v131
    %v336 = vunpack.c.h.b16 %v131
    %v337 = vunpack.c.l.b16 %v132
    %v338 = vunpack.c.h.b16 %v132
    %v339 = vunpack.c.l.b16 %v133
    %v340 = vunpack.c.h.b16 %v133
    %v341 = vunpack.c.l.b16 %v134
    %v342 = vunpack.c.h.b16 %v134
    %v343 = vunpack.c.l.b16 %v135
    %v344 = vunpack.c.h.b16 %v135
    %v345 = vunpack.c.l.b16 %v136
    %v346 = vunpack.c.h.b16 %v136
    %v347 = vunpack.c.l.b16 %v137
    %v348 = vunpack.c.h.b16 %v137
    %v349 = vunpack.c.l.b16 %v138
    %v350 = vunpack.c.h.b16 %v138
    %v351 = vunpack.c.l.b16 %v139
    %v352 = vunpack.c.h.b16 %v139
    %v353 = vunpack.c.l.b16 %v140
    %v354 = vunpack.c.h.b16 %v140
    %v355 = vunpack.c.l.b16 %v141
    %v356 = vunpack.c.h.b16 %v141
    %v357 = vunpack.c.l.b16 %v142
    %v358 = vunpack.c.h.b16 %v142
    %v359 = vunpack.c.l.b16 %v143
    %v360 = vunpack.c.h.b16 %v143
    %v361 = vunpack.c.l.b16 %v144
    %v362 = vunpack.c.h.b16 %v144
    %v363 = vunpack.c.l.b16 %v145
    %v364 = vunpack.c.h.b16 %v145
    %v365 = vunpack.c.l.b16 %v146
    %v366 = vunpack.c.h.b16 %v146
    %v367 = vunpack.c.l.b16 %v147
    %v368 = vunpack.c.h.b16 %v147
    %v369 = vpack.c.b16 %v245, %v241
    %v370 = vpack.c.b16 %v246, %v242
    %v371 = vpack.c.b16 %v247, %v243
    %v372 = vpack.c.b16 %v248, %v244
    %v373 = vpack.c.b16 %v253, %v249
    %v374 = vpack.c.b16 %v254, %v250
    %v375 = vpack.c.b16 %v255, %v251
    %v376 = vpack.c.b16 %v256, %v252
    %v377 = vpack.c.b16 %v261, %v257
    %v378 = vpack.c.b16 %v262, %v258
    %v379 = vpack.c.b16 %v263, %v259
    %v380 = vpack.c.b16 %v264, %v260
    %v381 = vpack.c.b16 %v269, %v265
    %v382 = vpack.c.b16 %v270, %v266
    %v383 = vpack.c.b16 %v271, %v267
    %v384 = vpack.c.b16 %v272, %v268
    %v385 = vpack.c.b16 %v277, %v273
    %v386 = vpack.c.b16 %v278, %v274
    %v387 = vpack.c.b16 %v279, %v275
    %v388 = vpack.c.b16 %v280, %v276
    %v389 = vpack.c.b16 %v285, %v281
    %v390 = vpack.c.b16 %v286, %v282
    %v391 = vpack.c.b16 %v287, %v283
    %v392 = vpack.c.b16 %v288, %v284
    %v393 = vpack.c.b16 %v293, %v289
    %v394 = vpack.c.b16 %v294, %v290
    %v395 = vpack.c.b16 %v295, %v291
    %v396 = vpack.c.b16 %v296, %v292
    %v397 = vpack.c.b16 %v301, %v297
    %v398 = vpack.c.b16 %v302, %v298
    %v399 = vpack.c.b16 %v303, %v299
    %v400 = vpack.c.b16 %v304, %v300
    %v401 = vpack.c.b16 %v309, %v305
    %v402 = vpack.c.b16 %v310, %v306
    %v403 = vpack.c.b16 %v311, %v307
    %v404 = vpack.c.b16 %v312, %v308
    %v405 = vpack.c.b16 %v317, %v313
    %v406 = vpack.c.b16 %v318, %v314
    %v407 = vpack.c.b16 %v319, %v315
    %v408 = vpack.c.b16 %v320, %v316
    %v409 = vpack.c.b16 %v325, %v321
    %v410 = vpack.c.b16 %v326, %v322
    %v411 = vpack.c.b16 %v327, %v323
    %v412 = vpack.c.b16 %v328, %v324
    %v413 = vpack.c.b16 %v333, %v329
    %v414 = vpack.c.b16 %v334, %v330
    %v415 = vpack.c.b16 %v335, %v331
    %v416 = vpack.c.b16 %v336, %v332
    %v417 = vpack.c.b16 %v341, %v337
    %v418 = vpack.c.b16 %v342, %v338
    %v419 = vpack.c.b16 %v343, %v339
    %v420 = vpack.c.b16 %v344, %v340
    %v421 = vpack.c.b16 %v349, %v345
    %v422 = vpack.c.b16 %v350, %v346
    %v423 = vpack.c.b16 %v351, %v347
    %v424 = vpack.c.b16 %v352, %v348
    %v425 = vpack.c.b16 %v357, %v353
    %v426 = vpack.c.b16 %v358, %v354
    %v427 = vpack.c.b16 %v359, %v355
    %v428 = vpack.c.b16 %v360, %v356
    %v429 = vpack.c.b16 %v365, %v361
    %v430 = vpack.c.b16 %v366, %v362
    %v431 = vpack.c.b16 %v367, %v363
    %v432 = vpack.c.b16 %v368, %v364
    %497 = vmatprep.subr.bf16.mxu0 %v370
    %498 = vmatpush1.bf16.msra.mxu0 %v369
    %499 = vmatprep.subr.bf16.mxu0 %v374
    %500 = vmatpush1.bf16.msra.mxu0 %v373
    %501 = vmatprep.subr.bf16.mxu0 %v378
    %502 = vmatpush1.bf16.msra.mxu0 %v377
    %503 = vmatprep.subr.bf16.mxu0 %v382
    %504 = vmatpush1.bf16.msra.mxu0 %v381
    %505 = vmatprep.subr.bf16.mxu0 %v386
    %506 = vmatpush1.bf16.msra.mxu0 %v385
    %507 = vmatprep.subr.bf16.mxu0 %v390
    %508 = vmatpush1.bf16.msra.mxu0 %v389
    %509 = vmatprep.subr.bf16.mxu0 %v394
    %510 = vmatpush1.bf16.msra.mxu0 %v393
    %511 = vmatprep.subr.bf16.mxu0 %v398
    %512 = vmatpush1.bf16.msra.mxu0 %v397
    %513 = vmatprep.subr.bf16.mxu0 %v402
    %514 = vmatpush1.bf16.msra.mxu0 %v401
    %515 = vmatprep.subr.bf16.mxu0 %v406
    %516 = vmatpush1.bf16.msra.mxu0 %v405
    %517 = vmatprep.subr.bf16.mxu0 %v410
    %518 = vmatpush1.bf16.msra.mxu0 %v409
    %519 = vmatprep.subr.bf16.mxu0 %v414
    %520 = vmatpush1.bf16.msra.mxu0 %v413
    %521 = vmatprep.subr.bf16.mxu0 %v418
    %522 = vmatpush1.bf16.msra.mxu0 %v417
    %523 = vmatprep.subr.bf16.mxu0 %v422
    %524 = vmatpush1.bf16.msra.mxu0 %v421
    %525 = vmatprep.subr.bf16.mxu0 %v426
    %526 = vmatpush1.bf16.msra.mxu0 %v425
    %527 = vmatprep.subr.bf16.mxu0 %v430
    %528 = vmatpush1.bf16.msra.mxu0 %v429
    %529 = vmatprep.mubr.bf16.mxu0 %v174
    %530 = vmatmul.mubr.bf16.gmra.mrb[0].mxu0 %v173
    %v531 = vpop.f32.mrb[0].mxu0
    %v532 = vadd.f32 %v153, %v531
    %v533 = vpop.f32.mrb[0].mxu0
    %v534 = vadd.f32 %v157, %v533
    %v535 = vpop.f32.mrb[0].mxu0
    %v536 = vpop.f32.mrb[0].mxu0
    %537 = vdwg.mxu0
    %538 = vmatprep.subr.bf16.mxu0 %v372
    %539 = vmatpush1.bf16.msra.mxu0 %v371
    %540 = vmatprep.subr.bf16.mxu0 %v376
    %541 = vmatpush1.bf16.msra.mxu0 %v375
    %542 = vmatprep.subr.bf16.mxu0 %v380
    %543 = vmatpush1.bf16.msra.mxu0 %v379
    %544 = vmatprep.subr.bf16.mxu0 %v384
    %545 = vmatpush1.bf16.msra.mxu0 %v383
    %546 = vmatprep.subr.bf16.mxu0 %v388
    %547 = vmatpush1.bf16.msra.mxu0 %v387
    %548 = vmatprep.subr.bf16.mxu0 %v392
    %549 = vmatpush1.bf16.msra.mxu0 %v391
    %550 = vmatprep.subr.bf16.mxu0 %v396
    %551 = vmatpush1.bf16.msra.mxu0 %v395
    %552 = vmatprep.subr.bf16.mxu0 %v400
    %553 = vmatpush1.bf16.msra.mxu0 %v399
    %554 = vmatprep.subr.bf16.mxu0 %v404
    %555 = vmatpush1.bf16.msra.mxu0 %v403
    %556 = vmatprep.subr.bf16.mxu0 %v408
    %557 = vmatpush1.bf16.msra.mxu0 %v407
    %558 = vmatprep.subr.bf16.mxu0 %v412
    %559 = vmatpush1.bf16.msra.mxu0 %v411
    %560 = vmatprep.subr.bf16.mxu0 %v416
    %561 = vmatpush1.bf16.msra.mxu0 %v415
    %562 = vmatprep.subr.bf16.mxu0 %v420
    %563 = vmatpush1.bf16.msra.mxu0 %v419
    %564 = vmatprep.subr.bf16.mxu0 %v424
    %565 = vmatpush1.bf16.msra.mxu0 %v423
    %566 = vmatprep.subr.bf16.mxu0 %v428
    %567 = vmatpush1.bf16.msra.mxu0 %v427
    %568 = vmatprep.subr.bf16.mxu0 %v432
    %569 = vmatpush1.bf16.msra.mxu0 %v431
    %570 = vmatprep.mubr.bf16.mxu0 %v174
    %571 = vmatmul.mubr.bf16.gmra.mrb[0].mxu0 %v173
    %v572 = vpop.f32.mrb[0].mxu0
    %v573 = vadd.f32 %v161, %v572
    %v574 = vpop.f32.mrb[0].mxu0
    %v575 = vadd.f32 %v165, %v574
    %v576 = vpop.f32.mrb[0].mxu0
    %v577 = vpop.f32.mrb[0].mxu0
    %578 = vdwg.mxu0
    %v579 = vld [vmem:[#allocation8] sm:$0xff]
    %v580 = vxor.u32 %v532, 2147483648
    %v581 = vmul.f32 %v580, 1.442695
    %v582 = vpow.pop %v581
    %v583 = vadd.f32 %v582, 1.0
    %v584 = vrcp.pop %v583
    %v585 = vmul.f32 1.0, %v584
    %v586 = vxor.u32 %v534, 2147483648
    %v587 = vmul.f32 %v586, 1.442695
    %v588 = vpow.pop %v587
    %v589 = vadd.f32 %v588, 1.0
    %v590 = vrcp.pop %v589
    %v591 = vmul.f32 1.0, %v590
    %v592 = vtanh.pop %v573
    %v593 = vxor.u32 %v575, 2147483648
    %v594 = vmul.f32 %v593, 1.442695
    %v595 = vpow.pop %v594
    %v596 = vadd.f32 %v595, 1.0
    %v597 = vrcp.pop %v596
    %v598 = vmul.f32 1.0, %v597
    %v599 = vmul.f32 %v591, %v579
    %v600 = vmul.f32 %v585, %v592
    %v601 = vadd.f32 %v599, %v600
    %v602 = vtanh.pop %v601
    %v603 = vmul.f32 %v598, %v602
    %604 = vst [vmem:[#allocation11] sm:$0xff] %v603
    %605 = vst [vmem:[#allocation12] sm:$0xff] %v601
    %v606 = vpack.c.bf16 %v603, %v603
    %607 = vst [vmem:[#allocation2 + $0x4] sm:$0xf] %v606
    %s608 = scalar_lea.vmem [#allocation6], 8
    %v609 = vld [vmem:[%s608] sm:$0xff]
    %v610 = vpack.c.bf16 %v609, %v609
    %611 = vst [vmem:[#allocation2] sm:$0xf] %v610
    %v612 = vld [vmem:[#allocation2] sm:$0xff]
    %s613 = scalar_lea.vmem [#allocation9], 512
    %v614 = vld [vmem:[%s613] sm:$0xff]
    %v615 = vld [vmem:[%s613 + $0x8] sm:$0xff]
    %v616 = vld [vmem:[%s613 + $0x10] sm:$0xff]
    %v617 = vld [vmem:[%s613 + $0x18] sm:$0xff]
    %v618 = vld [vmem:[%s613 + $0x20] sm:$0xff]
    %v619 = vld [vmem:[%s613 + $0x28] sm:$0xff]
    %v620 = vld [vmem:[%s613 + $0x30] sm:$0xff]
    %v621 = vld [vmem:[%s613 + $0x38] sm:$0xff]
    %v622 = vld [vmem:[%s613 + $0x40] sm:$0xff]
    %v623 = vld [vmem:[%s613 + $0x48] sm:$0xff]
    %v624 = vld [vmem:[%s613 + $0x50] sm:$0xff]
    %v625 = vld [vmem:[%s613 + $0x58] sm:$0xff]
    %v626 = vld [vmem:[%s613 + $0x60] sm:$0xff]
    %v627 = vld [vmem:[%s613 + $0x68] sm:$0xff]
    %v628 = vld [vmem:[%s613 + $0x70] sm:$0xff]
    %v629 = vld [vmem:[%s613 + $0x78] sm:$0xff]
    %v630 = vld [vmem:[%s613 + $0x80] sm:$0xff]
    %v631 = vld [vmem:[%s613 + $0x88] sm:$0xff]
    %v632 = vld [vmem:[%s613 + $0x90] sm:$0xff]
    %v633 = vld [vmem:[%s613 + $0x98] sm:$0xff]
    %v634 = vld [vmem:[%s613 + $0xa0] sm:$0xff]
    %v635 = vld [vmem:[%s613 + $0xa8] sm:$0xff]
    %v636 = vld [vmem:[%s613 + $0xb0] sm:$0xff]
    %v637 = vld [vmem:[%s613 + $0xb8] sm:$0xff]
    %v638 = vld [vmem:[%s613 + $0xc0] sm:$0xff]
    %v639 = vld [vmem:[%s613 + $0xc8] sm:$0xff]
    %v640 = vld [vmem:[%s613 + $0xd0] sm:$0xff]
    %v641 = vld [vmem:[%s613 + $0xd8] sm:$0xff]
    %v642 = vld [vmem:[%s613 + $0xe0] sm:$0xff]
    %v643 = vld [vmem:[%s613 + $0xe8] sm:$0xff]
    %v644 = vld [vmem:[%s613 + $0xf0] sm:$0xff]
    %v645 = vld [vmem:[%s613 + $0xf8] sm:$0xff]
    %v646 = vld [vmem:[%s613 + $0x100] sm:$0xff]
    %v647 = vld [vmem:[%s613 + $0x108] sm:$0xff]
    %v648 = vld [vmem:[%s613 + $0x110] sm:$0xff]
    %v649 = vld [vmem:[%s613 + $0x118] sm:$0xff]
    %v650 = vld [vmem:[%s613 + $0x120] sm:$0xff]
    %v651 = vld [vmem:[%s613 + $0x128] sm:$0xff]
    %v652 = vld [vmem:[%s613 + $0x130] sm:$0xff]
    %v653 = vld [vmem:[%s613 + $0x138] sm:$0xff]
    %v654 = vld [vmem:[%s613 + $0x140] sm:$0xff]
    %v655 = vld [vmem:[%s613 + $0x148] sm:$0xff]
    %v656 = vld [vmem:[%s613 + $0x150] sm:$0xff]
    %v657 = vld [vmem:[%s613 + $0x158] sm:$0xff]
    %v658 = vld [vmem:[%s613 + $0x160] sm:$0xff]
    %v659 = vld [vmem:[%s613 + $0x168] sm:$0xff]
    %v660 = vld [vmem:[%s613 + $0x170] sm:$0xff]
    %v661 = vld [vmem:[%s613 + $0x178] sm:$0xff]
    %v662 = vld [vmem:[%s613 + $0x180] sm:$0xff]
    %v663 = vld [vmem:[%s613 + $0x188] sm:$0xff]
    %v664 = vld [vmem:[%s613 + $0x190] sm:$0xff]
    %v665 = vld [vmem:[%s613 + $0x198] sm:$0xff]
    %v666 = vld [vmem:[%s613 + $0x1a0] sm:$0xff]
    %v667 = vld [vmem:[%s613 + $0x1a8] sm:$0xff]
    %v668 = vld [vmem:[%s613 + $0x1b0] sm:$0xff]
    %v669 = vld [vmem:[%s613 + $0x1b8] sm:$0xff]
    %v670 = vld [vmem:[%s613 + $0x1c0] sm:$0xff]
    %v671 = vld [vmem:[%s613 + $0x1c8] sm:$0xff]
    %v672 = vld [vmem:[%s613 + $0x1d0] sm:$0xff]
    %v673 = vld [vmem:[%s613 + $0x1d8] sm:$0xff]
    %v674 = vld [vmem:[%s613 + $0x1e0] sm:$0xff]
    %v675 = vld [vmem:[%s613 + $0x1e8] sm:$0xff]
    %v676 = vld [vmem:[%s613 + $0x1f0] sm:$0xff]
    %v677 = vld [vmem:[%s613 + $0x1f8] sm:$0xff]
    %s678 = scalar_lea.vmem %s4, 4
    %v679 = vld [vmem:[%s678] sm:$0xf]
    %v681 = vlaneseq
    %v682 = vshrl.u32 %v681, 7
    %v683 = vsub.s32 0, %v682
    %v684 = vrot.slane %v679, %v683
    %v685 = vlaneseq
    %v686 = vshrl.u32 %v685, 7
    %v687 = vsub.s32 1, %v686
    %v688 = vrot.slane %v679, %v687
    %v689 = vlaneseq
    %v690 = vshrl.u32 %v689, 7
    %v691 = vsub.s32 2, %v690
    %v692 = vrot.slane %v679, %v691
    %v693 = vlaneseq
    %v694 = vshrl.u32 %v693, 7
    %v695 = vsub.s32 3, %v694
    %v696 = vrot.slane %v679, %v695
    %v702 = vunpack.c.l.b16 %v612
    %v703 = vunpack.c.h.b16 %v612
    %v704 = vpack.c.b16 %v702, %v702
    %v705 = vpack.c.b16 %v703, %v703
    %v772 = vunpack.c.l.b16 %v614
    %v773 = vunpack.c.h.b16 %v614
    %v774 = vunpack.c.l.b16 %v615
    %v775 = vunpack.c.h.b16 %v615
    %v776 = vunpack.c.l.b16 %v616
    %v777 = vunpack.c.h.b16 %v616
    %v778 = vunpack.c.l.b16 %v617
    %v779 = vunpack.c.h.b16 %v617
    %v780 = vunpack.c.l.b16 %v618
    %v781 = vunpack.c.h.b16 %v618
    %v782 = vunpack.c.l.b16 %v619
    %v783 = vunpack.c.h.b16 %v619
    %v784 = vunpack.c.l.b16 %v620
    %v785 = vunpack.c.h.b16 %v620
    %v786 = vunpack.c.l.b16 %v621
    %v787 = vunpack.c.h.b16 %v621
    %v788 = vunpack.c.l.b16 %v622
    %v789 = vunpack.c.h.b16 %v622
    %v790 = vunpack.c.l.b16 %v623
    %v791 = vunpack.c.h.b16 %v623
    %v792 = vunpack.c.l.b16 %v624
    %v793 = vunpack.c.h.b16 %v624
    %v794 = vunpack.c.l.b16 %v625
    %v795 = vunpack.c.h.b16 %v625
    %v796 = vunpack.c.l.b16 %v626
    %v797 = vunpack.c.h.b16 %v626
    %v798 = vunpack.c.l.b16 %v627
    %v799 = vunpack.c.h.b16 %v627
    %v800 = vunpack.c.l.b16 %v628
    %v801 = vunpack.c.h.b16 %v628
    %v802 = vunpack.c.l.b16 %v629
    %v803 = vunpack.c.h.b16 %v629
    %v804 = vunpack.c.l.b16 %v630
    %v805 = vunpack.c.h.b16 %v630
    %v806 = vunpack.c.l.b16 %v631
    %v807 = vunpack.c.h.b16 %v631
    %v808 = vunpack.c.l.b16 %v632
    %v809 = vunpack.c.h.b16 %v632
    %v810 = vunpack.c.l.b16 %v633
    %v811 = vunpack.c.h.b16 %v633
    %v812 = vunpack.c.l.b16 %v634
    %v813 = vunpack.c.h.b16 %v634
    %v814 = vunpack.c.l.b16 %v635
    %v815 = vunpack.c.h.b16 %v635
    %v816 = vunpack.c.l.b16 %v636
    %v817 = vunpack.c.h.b16 %v636
    %v818 = vunpack.c.l.b16 %v637
    %v819 = vunpack.c.h.b16 %v637
    %v820 = vunpack.c.l.b16 %v638
    %v821 = vunpack.c.h.b16 %v638
    %v822 = vunpack.c.l.b16 %v639
    %v823 = vunpack.c.h.b16 %v639
    %v824 = vunpack.c.l.b16 %v640
    %v825 = vunpack.c.h.b16 %v640
    %v826 = vunpack.c.l.b16 %v641
    %v827 = vunpack.c.h.b16 %v641
    %v828 = vunpack.c.l.b16 %v642
    %v829 = vunpack.c.h.b16 %v642
    %v830 = vunpack.c.l.b16 %v643
    %v831 = vunpack.c.h.b16 %v643
    %v832 = vunpack.c.l.b16 %v644
    %v833 = vunpack.c.h.b16 %v644
    %v834 = vunpack.c.l.b16 %v645
    %v835 = vunpack.c.h.b16 %v645
    %v836 = vunpack.c.l.b16 %v646
    %v837 = vunpack.c.h.b16 %v646
    %v838 = vunpack.c.l.b16 %v647
    %v839 = vunpack.c.h.b16 %v647
    %v840 = vunpack.c.l.b16 %v648
    %v841 = vunpack.c.h.b16 %v648
    %v842 = vunpack.c.l.b16 %v649
    %v843 = vunpack.c.h.b16 %v649
    %v844 = vunpack.c.l.b16 %v650
    %v845 = vunpack.c.h.b16 %v650
    %v846 = vunpack.c.l.b16 %v651
    %v847 = vunpack.c.h.b16 %v651
    %v848 = vunpack.c.l.b16 %v652
    %v849 = vunpack.c.h.b16 %v652
    %v850 = vunpack.c.l.b16 %v653
    %v851 = vunpack.c.h.b16 %v653
    %v852 = vunpack.c.l.b16 %v654
    %v853 = vunpack.c.h.b16 %v654
    %v854 = vunpack.c.l.b16 %v655
    %v855 = vunpack.c.h.b16 %v655
    %v856 = vunpack.c.l.b16 %v656
    %v857 = vunpack.c.h.b16 %v656
    %v858 = vunpack.c.l.b16 %v657
    %v859 = vunpack.c.h.b16 %v657
    %v860 = vunpack.c.l.b16 %v658
    %v861 = vunpack.c.h.b16 %v658
    %v862 = vunpack.c.l.b16 %v659
    %v863 = vunpack.c.h.b16 %v659
    %v864 = vunpack.c.l.b16 %v660
    %v865 = vunpack.c.h.b16 %v660
    %v866 = vunpack.c.l.b16 %v661
    %v867 = vunpack.c.h.b16 %v661
    %v868 = vunpack.c.l.b16 %v662
    %v869 = vunpack.c.h.b16 %v662
    %v870 = vunpack.c.l.b16 %v663
    %v871 = vunpack.c.h.b16 %v663
    %v872 = vunpack.c.l.b16 %v664
    %v873 = vunpack.c.h.b16 %v664
    %v874 = vunpack.c.l.b16 %v665
    %v875 = vunpack.c.h.b16 %v665
    %v876 = vunpack.c.l.b16 %v666
    %v877 = vunpack.c.h.b16 %v666
    %v878 = vunpack.c.l.b16 %v667
    %v879 = vunpack.c.h.b16 %v667
    %v880 = vunpack.c.l.b16 %v668
    %v881 = vunpack.c.h.b16 %v668
    %v882 = vunpack.c.l.b16 %v669
    %v883 = vunpack.c.h.b16 %v669
    %v884 = vunpack.c.l.b16 %v670
    %v885 = vunpack.c.h.b16 %v670
    %v886 = vunpack.c.l.b16 %v671
    %v887 = vunpack.c.h.b16 %v671
    %v888 = vunpack.c.l.b16 %v672
    %v889 = vunpack.c.h.b16 %v672
    %v890 = vunpack.c.l.b16 %v673
    %v891 = vunpack.c.h.b16 %v673
    %v892 = vunpack.c.l.b16 %v674
    %v893 = vunpack.c.h.b16 %v674
    %v894 = vunpack.c.l.b16 %v675
    %v895 = vunpack.c.h.b16 %v675
    %v896 = vunpack.c.l.b16 %v676
    %v897 = vunpack.c.h.b16 %v676
    %v898 = vunpack.c.l.b16 %v677
    %v899 = vunpack.c.h.b16 %v677
    %v900 = vpack.c.b16 %v776, %v772
    %v901 = vpack.c.b16 %v777, %v773
    %v902 = vpack.c.b16 %v778, %v774
    %v903 = vpack.c.b16 %v779, %v775
    %v904 = vpack.c.b16 %v784, %v780
    %v905 = vpack.c.b16 %v785, %v781
    %v906 = vpack.c.b16 %v786, %v782
    %v907 = vpack.c.b16 %v787, %v783
    %v908 = vpack.c.b16 %v792, %v788
    %v909 = vpack.c.b16 %v793, %v789
    %v910 = vpack.c.b16 %v794, %v790
    %v911 = vpack.c.b16 %v795, %v791
    %v912 = vpack.c.b16 %v800, %v796
    %v913 = vpack.c.b16 %v801, %v797
    %v914 = vpack.c.b16 %v802, %v798
    %v915 = vpack.c.b16 %v803, %v799
    %v916 = vpack.c.b16 %v808, %v804
    %v917 = vpack.c.b16 %v809, %v805
    %v918 = vpack.c.b16 %v810, %v806
    %v919 = vpack.c.b16 %v811, %v807
    %v920 = vpack.c.b16 %v816, %v812
    %v921 = vpack.c.b16 %v817, %v813
    %v922 = vpack.c.b16 %v818, %v814
    %v923 = vpack.c.b16 %v819, %v815
    %v924 = vpack.c.b16 %v824, %v820
    %v925 = vpack.c.b16 %v825, %v821
    %v926 = vpack.c.b16 %v826, %v822
    %v927 = vpack.c.b16 %v827, %v823
    %v928 = vpack.c.b16 %v832, %v828
    %v929 = vpack.c.b16 %v833, %v829
    %v930 = vpack.c.b16 %v834, %v830
    %v931 = vpack.c.b16 %v835, %v831
    %v932 = vpack.c.b16 %v840, %v836
    %v933 = vpack.c.b16 %v841, %v837
    %v934 = vpack.c.b16 %v842, %v838
    %v935 = vpack.c.b16 %v843, %v839
    %v936 = vpack.c.b16 %v848, %v844
    %v937 = vpack.c.b16 %v849, %v845
    %v938 = vpack.c.b16 %v850, %v846
    %v939 = vpack.c.b16 %v851, %v847
    %v940 = vpack.c.b16 %v856, %v852
    %v941 = vpack.c.b16 %v857, %v853
    %v942 = vpack.c.b16 %v858, %v854
    %v943 = vpack.c.b16 %v859, %v855
    %v944 = vpack.c.b16 %v864, %v860
    %v945 = vpack.c.b16 %v865, %v861
    %v946 = vpack.c.b16 %v866, %v862
    %v947 = vpack.c.b16 %v867, %v863
    %v948 = vpack.c.b16 %v872, %v868
    %v949 = vpack.c.b16 %v873, %v869
    %v950 = vpack.c.b16 %v874, %v870
    %v951 = vpack.c.b16 %v875, %v871
    %v952 = vpack.c.b16 %v880, %v876
    %v953 = vpack.c.b16 %v881, %v877
    %v954 = vpack.c.b16 %v882, %v878
    %v955 = vpack.c.b16 %v883, %v879
    %v956 = vpack.c.b16 %v888, %v884
    %v957 = vpack.c.b16 %v889, %v885
    %v958 = vpack.c.b16 %v890, %v886
    %v959 = vpack.c.b16 %v891, %v887
    %v960 = vpack.c.b16 %v896, %v892
    %v961 = vpack.c.b16 %v897, %v893
    %v962 = vpack.c.b16 %v898, %v894
    %v963 = vpack.c.b16 %v899, %v895
    %1028 = vmatprep.subr.bf16.mxu0 %v901
    %1029 = vmatpush1.bf16.msra.mxu0 %v900
    %1030 = vmatprep.subr.bf16.mxu0 %v905
    %1031 = vmatpush1.bf16.msra.mxu0 %v904
    %1032 = vmatprep.subr.bf16.mxu0 %v909
    %1033 = vmatpush1.bf16.msra.mxu0 %v908
    %1034 = vmatprep.subr.bf16.mxu0 %v913
    %1035 = vmatpush1.bf16.msra.mxu0 %v912
    %1036 = vmatprep.subr.bf16.mxu0 %v917
    %1037 = vmatpush1.bf16.msra.mxu0 %v916
    %1038 = vmatprep.subr.bf16.mxu0 %v921
    %1039 = vmatpush1.bf16.msra.mxu0 %v920
    %1040 = vmatprep.subr.bf16.mxu0 %v925
    %1041 = vmatpush1.bf16.msra.mxu0 %v924
    %1042 = vmatprep.subr.bf16.mxu0 %v929
    %1043 = vmatpush1.bf16.msra.mxu0 %v928
    %1044 = vmatprep.subr.bf16.mxu0 %v933
    %1045 = vmatpush1.bf16.msra.mxu0 %v932
    %1046 = vmatprep.subr.bf16.mxu0 %v937
    %1047 = vmatpush1.bf16.msra.mxu0 %v936
    %1048 = vmatprep.subr.bf16.mxu0 %v941
    %1049 = vmatpush1.bf16.msra.mxu0 %v940
    %1050 = vmatprep.subr.bf16.mxu0 %v945
    %1051 = vmatpush1.bf16.msra.mxu0 %v944
    %1052 = vmatprep.subr.bf16.mxu0 %v949
    %1053 = vmatpush1.bf16.msra.mxu0 %v948
    %1054 = vmatprep.subr.bf16.mxu0 %v953
    %1055 = vmatpush1.bf16.msra.mxu0 %v952
    %1056 = vmatprep.subr.bf16.mxu0 %v957
    %1057 = vmatpush1.bf16.msra.mxu0 %v956
    %1058 = vmatprep.subr.bf16.mxu0 %v961
    %1059 = vmatpush1.bf16.msra.mxu0 %v960
    %1060 = vmatprep.mubr.bf16.mxu0 %v705
    %1061 = vmatmul.mubr.bf16.gmra.mrb[0].mxu0 %v704
    %v1062 = vpop.f32.mrb[0].mxu0
    %v1063 = vadd.f32 %v684, %v1062
    %v1064 = vpop.f32.mrb[0].mxu0
    %v1065 = vadd.f32 %v688, %v1064
    %v1066 = vpop.f32.mrb[0].mxu0
    %v1067 = vpop.f32.mrb[0].mxu0
    %1068 = vdwg.mxu0
    %1069 = vmatprep.subr.bf16.mxu0 %v903
    %1070 = vmatpush1.bf16.msra.mxu0 %v902
    %1071 = vmatprep.subr.bf16.mxu0 %v907
    %1072 = vmatpush1.bf16.msra.mxu0 %v906
    %1073 = vmatprep.subr.bf16.mxu0 %v911
    %1074 = vmatpush1.bf16.msra.mxu0 %v910
    %1075 = vmatprep.subr.bf16.mxu0 %v915
    %1076 = vmatpush1.bf16.msra.mxu0 %v914
    %1077 = vmatprep.subr.bf16.mxu0 %v919
    %1078 = vmatpush1.bf16.msra.mxu0 %v918
    %1079 = vmatprep.subr.bf16.mxu0 %v923
    %1080 = vmatpush1.bf16.msra.mxu0 %v922
    %1081 = vmatprep.subr.bf16.mxu0 %v927
    %1082 = vmatpush1.bf16.msra.mxu0 %v926
    %1083 = vmatprep.subr.bf16.mxu0 %v931
    %1084 = vmatpush1.bf16.msra.mxu0 %v930
    %1085 = vmatprep.subr.bf16.mxu0 %v935
    %1086 = vmatpush1.bf16.msra.mxu0 %v934
    %1087 = vmatprep.subr.bf16.mxu0 %v939
    %1088 = vmatpush1.bf16.msra.mxu0 %v938
    %1089 = vmatprep.subr.bf16.mxu0 %v943
    %1090 = vmatpush1.bf16.msra.mxu0 %v942
    %1091 = vmatprep.subr.bf16.mxu0 %v947
    %1092 = vmatpush1.bf16.msra.mxu0 %v946
    %1093 = vmatprep.subr.bf16.mxu0 %v951
    %1094 = vmatpush1.bf16.msra.mxu0 %v950
    %1095 = vmatprep.subr.bf16.mxu0 %v955
    %1096 = vmatpush1.bf16.msra.mxu0 %v954
    %1097 = vmatprep.subr.bf16.mxu0 %v959
    %1098 = vmatpush1.bf16.msra.mxu0 %v958
    %1099 = vmatprep.subr.bf16.mxu0 %v963
    %1100 = vmatpush1.bf16.msra.mxu0 %v962
    %1101 = vmatprep.mubr.bf16.mxu0 %v705
    %1102 = vmatmul.mubr.bf16.gmra.mrb[0].mxu0 %v704
    %v1103 = vpop.f32.mrb[0].mxu0
    %v1104 = vadd.f32 %v692, %v1103
    %v1105 = vpop.f32.mrb[0].mxu0
    %v1106 = vadd.f32 %v696, %v1105
    %v1107 = vpop.f32.mrb[0].mxu0
    %v1108 = vpop.f32.mrb[0].mxu0
    %1109 = vdwg.mxu0
    %s1110 = scalar_lea.vmem [#allocation8], 8
    %v1111 = vld [vmem:[%s1110] sm:$0xff]
    %v1112 = vxor.u32 %v1063, 2147483648
    %v1113 = vmul.f32 %v1112, 1.442695
    %v1114 = vpow.pop %v1113
    %v1115 = vadd.f32 %v1114, 1.0
    %v1116 = vrcp.pop %v1115
    %v1117 = vmul.f32 1.0, %v1116
    %v1118 = vxor.u32 %v1065, 2147483648
    %v1119 = vmul.f32 %v1118, 1.442695
    %v1120 = vpow.pop %v1119
    %v1121 = vadd.f32 %v1120, 1.0
    %v1122 = vrcp.pop %v1121
    %v1123 = vmul.f32 1.0, %v1122
    %v1124 = vtanh.pop %v1104
    %v1125 = vxor.u32 %v1106, 2147483648
    %v1126 = vmul.f32 %v1125, 1.442695
    %v1127 = vpow.pop %v1126
    %v1128 = vadd.f32 %v1127, 1.0
    %v1129 = vrcp.pop %v1128
    %v1130 = vmul.f32 1.0, %v1129
    %v1131 = vmul.f32 %v1123, %v1111
    %v1132 = vmul.f32 %v1117, %v1124
    %v1133 = vadd.f32 %v1131, %v1132
    %v1134 = vtanh.pop %v1133
    %v1135 = vmul.f32 %v1130, %v1134
    %s1136 = scalar_lea.vmem [#allocation11], 8
    %1137 = vst [vmem:[%s1136] sm:$0xff] %v1135
    %s1138 = scalar_lea.vmem [#allocation12], 8
    %1139 = vst [vmem:[%s1138] sm:$0xff] %v1133
    %v1140 = vpack.c.bf16 %v1135, %v1135
    %1141 = vst [vmem:[#allocation2 + $0x4] sm:$0xf] %v1140
    // Predicated region
    $region38: #{tpu_custom_call.1} parent=1 // pred_check
      _
    $region39: #{tpu_custom_call.1} parent=1 // pred_check_branch
      %1143 = sbr.rel (0) target = $region41
    $region40: #{tpu_custom_call.1} parent=1 // pred_region
      %s1145 = ssub.s32 256, 256
      %1146 = vsyncadd [#allocation5], %s1145
      %s1147 = sshll.u32 [#allocation11], 4
      %s1148 = int_to_ptr.vmem [resolvable:$true] %s1147
      %1153 = dma.vmem_to_hbm [thread:$0]  %s1148, 256, %s5, [#allocation5], 128, 128, 8
    $region41: #{tpu_custom_call.1} parent=1 // pred_fallthru
      _
    // Predicated region
    $region42: #{tpu_custom_call.1} parent=1 // pred_check
      _
    $region43: #{tpu_custom_call.1} parent=1 // pred_check_branch
      %1155 = sbr.rel (0) target = $region45
    $region44: #{tpu_custom_call.1} parent=1 // pred_region
      %s1157 = ssub.s32 256, 256
      %1158 = vsyncadd [#allocation13], %s1157
      %s1159 = sshll.u32 [#allocation12], 4
      %s1160 = int_to_ptr.vmem [resolvable:$true] %s1159
      %1165 = dma.vmem_to_hbm [thread:$0]  %s1160, 256, %s6, [#allocation13], 128, 128, 8
    $region45: #{tpu_custom_call.1} parent=1 // pred_fallthru
      _
    // Predicated region
    $region46: #{tpu_custom_call.1} parent=1 // pred_check
      _
    $region47: #{tpu_custom_call.1} parent=1 // pred_check_branch
      %1167 = sbr.rel (0) target = $region49
    $region48: #{tpu_custom_call.1} parent=1 // pred_region
      %1168 = dma.done [#allocation5], 256
    $region49: #{tpu_custom_call.1} parent=1 // pred_fallthru
      _
    // Predicated region
    $region50: #{tpu_custom_call.1} parent=1 // pred_check
      _
    $region51: #{tpu_custom_call.1} parent=1 // pred_check_branch
      %1170 = sbr.rel (0) target = $region53
    $region52: #{tpu_custom_call.1} parent=1 // pred_region
      %1171 = dma.done [#allocation13], 256
    $region53: #{tpu_custom_call.1} parent=1 // pred_fallthru
      _
    %1172 = vsyncpa [#allocation4], 1
    %1173 = vsyncpa [#allocation7], 1
    %1174 = vsyncpa [#allocation10], 1
    %1175 = vsyncpa [#allocation5], 1
    %1176 = vsyncpa [#allocation13], 1

</llo_original>
